<compile_context>
chip_gen: v6e
topology: v6e:2x2x1
jax: 0.10.0
libtpu: 0.0.40
codegen_flags: <defaults>
</compile_context>

<pallas_src>
import numpy as np
import jax
import jax.numpy as jnp
from jax.experimental import pallas as pl
from jax.experimental.pallas import tpu as pltpu


# ----------------------------------------------------------------------------
# Host-side (glue, runs once per parameter set): StronglyEntanglingLayers
# unitary and PauliZ observables M_i = Re(U^H Z_i U).  Pure numpy.
# ----------------------------------------------------------------------------
def _rot_gate(phi, theta, omega):
    c, s = np.cos(theta / 2.0), np.sin(theta / 2.0)
    return np.array(
        [[np.exp(-1j * (phi + omega) / 2.0) * c, -np.exp(1j * (phi - omega) / 2.0) * s],
         [np.exp(-1j * (phi - omega) / 2.0) * s,  np.exp(1j * (phi + omega) / 2.0) * c]],
        dtype=np.complex128)


def _apply_single_qubit(U, g, wire, n):
    full = np.kron(np.kron(np.eye(2 ** wire), g), np.eye(2 ** (n - 1 - wire)))
    return full @ U


def _cnot_matrix(control, target, n):
    D = 2 ** n
    M = np.zeros((D, D), dtype=np.complex128)
    for k in range(D):
        cbit = (k >> (n - 1 - control)) & 1
        k2 = k ^ (1 << (n - 1 - target)) if cbit else k
        M[k2, k] = 1.0
    return M


def strongly_entangling_unitary(weights, n):
    """weights: (num_layers, n, 3) float64 -> full (2^n, 2^n) unitary."""
    D = 2 ** n
    U = np.eye(D, dtype=np.complex128)
    num_layers = weights.shape[0]
    for l in range(num_layers):
        for i in range(n):
            U = _apply_single_qubit(U, _rot_gate(*weights[l, i]), i, n)
        if n > 1:
            r = (l % (n - 1)) + 1  # PennyLane default ranges
            for i in range(n):
                U = _cnot_matrix(i, (i + r) % n, n) @ U
    return U


def pauli_z_observables(U, n):
    """M_i = Re(U^H Z_i U), shape (n, 2^n, 2^n) float64.

    Exact for this model: AmplitudeEmbedding of real features yields a real
    state vector, so the imaginary part of U^H Z_i U never contributes.
    """
    D = 2 ** n
    idx = np.arange(D)
    Ms = []
    for i in range(n):
        z = 1.0 - 2.0 * ((idx >> (n - 1 - i)) & 1)   # +1 if wire-i bit == 0
        M = U.conj().T @ (z[:, None] * U)
        Ms.append(np.real(M))
    return np.stack(Ms, axis=0)


def _round_up(x, m):
    return ((x + m - 1) // m) * m


# ----------------------------------------------------------------------------
# Pallas kernel: whole per-sample compute path for one tile of rows.
# Shapes (per tile): x (T,L), w_in (L,D), b_in (1,D), mcat (D,Q*D),
#                    rep (D,Q*D), w2 (Q*D,F), b_out (1,F), out (T,F).
# ----------------------------------------------------------------------------
def qultsf_kernel(x_ref, w_in_ref, b_in_ref, mcat_ref, rep_ref, w2_ref,
                  b_out_ref, o_ref):
    # input classical layer: y1 = x @ W_in^T + b_in
    x = x_ref[...]
    y1 = jnp.dot(x, w_in_ref[...], preferred_element_type=jnp.float32) + b_in_ref[...]

    # AmplitudeEmbedding(normalize=True) folded into the expectations:
    # embedded state is y1/||y1|| (real)  =>  <Z_i> = y1^T M_i y1 / ||y1||^2.
    # eps guard: PennyLane would raise on an all-zero row; we clamp instead
    # (also keeps zero-padded rows finite).
    norm_sq = jnp.maximum(jnp.sum(y1 * y1, axis=-1, keepdims=True), 1e-12)
    r = pl.reciprocal(norm_sq, approx=True)      # EUP slot (free-ish)
    inv_norm = r * (2.0 - norm_sq * r)           # one Newton step -> f32 accuracy

    # All Q quadratic forms + the output linear layer fused into matmuls:
    #   t[:, i*D+e]   = (y1 @ M_i)[:, e]
    #   y1r[:, i*D+e] = y1[:, e]          (lane replication done on the MXU)
    #   (t*y1r) @ W2  = sum_i (y1^T M_i y1) * W_out[:, i]
    t = jnp.dot(y1, mcat_ref[...], preferred_element_type=jnp.float32)
    y1r = jnp.dot(y1, rep_ref[...], preferred_element_type=jnp.float32)
    prod = t * y1r
    out = (jnp.dot(prod, w2_ref[...], preferred_element_type=jnp.float32)
           * inv_norm + b_out_ref[...])
    o_ref[...] = out.astype(o_ref.dtype)


# ----------------------------------------------------------------------------
# Factory: hoists all host-side quantum precompute out of the hot path and
# returns a jitted forward(batch_input) -> (B, C, F).
# ----------------------------------------------------------------------------
def make_hybrid_qml_forward(w_in, b_in, q_weights, w_out, b_out, num_qubits,
                            tile_n=2048):
    assert tile_n % 8 == 0, "tile_n must be a multiple of 8 (sublane)"
    D = 2 ** num_qubits
    Q = num_qubits
    L = int(np.asarray(w_in).shape[1])
    F = int(np.asarray(w_out).shape[0])

    # one-time host-side quantum-layer construction (f64, then cast)
    U = strongly_entangling_unitary(np.asarray(q_weights, np.float64), num_qubits)
    M = pauli_z_observables(U, num_qubits)                       # (Q, D, D)
    mcat_np = np.concatenate([M[i] for i in range(Q)], axis=1)   # (D, Q*D)
    rep_np = np.tile(np.eye(D, dtype=np.float64), (1, Q))        # (D, Q*D)
    w_out_t = np.asarray(w_out, np.float64).T                    # (Q, F)
    w2_np = np.repeat(w_out_t, D, axis=0)                        # (Q*D, F)

    w_in_t = jnp.asarray(np.asarray(w_in, np.float64).T, jnp.float32)       # (L, D)
    b_in_2d = jnp.asarray(np.asarray(b_in, np.float64).reshape(1, D), jnp.float32)
    mcat = jnp.asarray(mcat_np, jnp.float32)
    rep = jnp.asarray(rep_np, jnp.float32)
    w2 = jnp.asarray(w2_np, jnp.float32)
    b_out_2d = jnp.asarray(np.asarray(b_out, np.float64).reshape(1, F), jnp.float32)

    @jax.jit
    def forward(batch_input):
        B, C, Lx = batch_input.shape
        N = B * C
        tile = min(tile_n, _round_up(N, 8))
        n_pad = _round_up(N, tile)

        x2 = batch_input.reshape(N, Lx).astype(jnp.float32)
        if n_pad != N:
            x2 = jnp.pad(x2, ((0, n_pad - N), (0, 0)))   # zero rows, sliced off below

        out = pl.pallas_call(
            qultsf_kernel,
            out_shape=jax.ShapeDtypeStruct((n_pad, F), jnp.float32),
            grid=(n_pad // tile,),
            in_specs=[
                pl.BlockSpec((tile, Lx), lambda i: (i, 0)),     # x: tiled over rows
                pl.BlockSpec((Lx, D), lambda i: (0, 0)),        # W_in^T (full)
                pl.BlockSpec((1, D), lambda i: (0, 0)),         # b_in
                pl.BlockSpec((D, Q * D), lambda i: (0, 0)),     # Mcat
                pl.BlockSpec((D, Q * D), lambda i: (0, 0)),     # Rep (identity stack)
                pl.BlockSpec((Q * D, F), lambda i: (0, 0)),     # W2 (W_out folded)
                pl.BlockSpec((1, F), lambda i: (0, 0)),         # b_out
            ],
            out_specs=pl.BlockSpec((tile, F), lambda i: (i, 0)),
            compiler_params=pltpu.CompilerParams(
                dimension_semantics=("parallel",),              # both TCs on v7x
                vmem_limit_bytes=48 * 1024 * 1024,
            ),
        )(x2, w_in_t, b_in_2d, mcat, rep, w2, b_out_2d)

        return out[:N].reshape(B, C, F)

    return forward


# ----------------------------------------------------------------------------
# Pure-numpy reference (direct statevector simulation) for verification.
# ----------------------------------------------------------------------------
def reference_forward(batch_input, w_in, b_in, q_weights, w_out, b_out, num_qubits):
    B, C, L = batch_input.shape
    D = 2 ** num_qubits
    x = np.asarray(batch_input, np.float64).reshape(B * C, L)
    y1 = x @ np.asarray(w_in, np.float64).T + np.asarray(b_in, np.float64)
    psi0 = y1 / np.linalg.norm(y1, axis=1, keepdims=True)
    U = strongly_entangling_unitary(np.asarray(q_weights, np.float64), num_qubits)
    psi = (U @ psi0.T.astype(np.complex128)).T
    probs = np.abs(psi) ** 2
    idx = np.arange(D)
    z = np.stack([1.0 - 2.0 * ((idx >> (num_qubits - 1 - i)) & 1)
                  for i in range(num_qubits)], axis=1)          # (D, Q)
    q = probs @ z                                                # (N, Q)
    out = q @ np.asarray(w_out, np.float64).T + np.asarray(b_out, np.float64)
    return out.reshape(B, C, -1)


if __name__ == "__main__":
    # small shapes consistent with the module
    B, C = 3, 8                       # batch, channels (series); N = 24 rows
    lookback_window_size = 16
    forecast_window_size = 8
    num_qubits = 4                    # 2**4 = 16 amplitudes
    num_layers = 2
    D = 2 ** num_qubits

    key = jax.random.PRNGKey(0)
    k1, k2, k3, k4, k5, k6 = jax.random.split(key, 6)

    # deterministic synthetic parameters (PyTorch Linear stores (out, in))
    w_in = jax.random.normal(k1, (D, lookback_window_size), jnp.float32) / np.sqrt(lookback_window_size)
    b_in = 0.1 * jax.random.normal(k2, (D,), jnp.float32)
    q_weights = jax.random.uniform(k3, (num_layers, num_qubits, 3), jnp.float32,
                                   minval=0.0, maxval=2.0 * np.pi)
    w_out = jax.random.normal(k4, (forecast_window_size, num_qubits), jnp.float32) / np.sqrt(num_qubits)
    b_out = 0.1 * jax.random.normal(k5, (forecast_window_size,), jnp.float32)

    batch_input = jax.random.normal(k6, (B, C, lookback_window_size), jnp.float32)

    # tile_n=16 so this tiny demo still exercises a multi-step grid + row padding
    # (production sizes use the default tile_n=2048).
    forward = make_hybrid_qml_forward(w_in, b_in, q_weights, w_out, b_out,
                                      num_qubits, tile_n=16)

    out = jax.block_until_ready(forward(batch_input))
    assert out.shape == (B, C, forecast_window_size)

    ref = reference_forward(batch_input, w_in, b_in, q_weights, w_out, b_out, num_qubits)
    np.testing.assert_allclose(np.asarray(out), ref, rtol=1e-3, atol=1e-3)

    print("KERNEL_OK")
</pallas_src>

<mosaic_0001>
module attributes {stable_mosaic.version = 11 : i64} {
  func.func @qultsf_kernel(%arg0: i32, %arg1: memref<16x16xf32, #tpu.memory_space<vmem>>, %arg2: memref<16x16xf32, #tpu.memory_space<vmem>>, %arg3: memref<1x16xf32, #tpu.memory_space<vmem>>, %arg4: memref<16x64xf32, #tpu.memory_space<vmem>>, %arg5: memref<16x64xf32, #tpu.memory_space<vmem>>, %arg6: memref<64x8xf32, #tpu.memory_space<vmem>>, %arg7: memref<1x8xf32, #tpu.memory_space<vmem>>, %arg8: memref<16x8xf32, #tpu.memory_space<vmem>>) attributes {dimension_semantics = [#tpu.dimension_semantics<parallel>], iteration_bounds = array<i64: 2>, scalar_prefetch = 0 : i64, scratch_operands = 0 : i64, tpu.core_type = #tpu.core_type<tc>, window_params = [{transform_indices = @transform_0, window_bounds = array<i64: 16, 16>}, {pipeline_mode = #tpu.pipeline_mode<synchronous>, transform_indices = @transform_1, window_bounds = array<i64: 16, 16>}, {pipeline_mode = #tpu.pipeline_mode<synchronous>, transform_indices = @transform_2, window_bounds = array<i64: 1, 16>}, {pipeline_mode = #tpu.pipeline_mode<synchronous>, transform_indices = @transform_3, window_bounds = array<i64: 16, 64>}, {pipeline_mode = #tpu.pipeline_mode<synchronous>, transform_indices = @transform_4, window_bounds = array<i64: 16, 64>}, {pipeline_mode = #tpu.pipeline_mode<synchronous>, transform_indices = @transform_5, window_bounds = array<i64: 64, 8>}, {pipeline_mode = #tpu.pipeline_mode<synchronous>, transform_indices = @transform_6, window_bounds = array<i64: 1, 8>}, {transform_indices = @transform_7, window_bounds = array<i64: 16, 8>}]} {
    %c0 = arith.constant 0 : index
    %c0_0 = arith.constant 0 : index
    %0 = vector.load %arg1[%c0, %c0_0] : memref<16x16xf32, #tpu.memory_space<vmem>>, vector<16x16xf32>
    %c0_1 = arith.constant 0 : index
    %c0_2 = arith.constant 0 : index
    %1 = vector.load %arg2[%c0_1, %c0_2] : memref<16x16xf32, #tpu.memory_space<vmem>>, vector<16x16xf32>
    %cst = arith.constant dense<0.000000e+00> : vector<16x16xf32>
    %2 = tpu.matmul %0, %1, %cst {dimension_numbers = #tpu.dot_dimension_numbers<[1], [0], [0], [1], [0, 0, 1, 1], [], []>} : vector<16x16xf32>, vector<16x16xf32>, vector<16x16xf32> -> vector<16x16xf32>
    %c0_3 = arith.constant 0 : index
    %c0_4 = arith.constant 0 : index
    %3 = vector.load %arg3[%c0_3, %c0_4] : memref<1x16xf32, #tpu.memory_space<vmem>>, vector<1x16xf32>
    %4 = vector.broadcast %3 : vector<1x16xf32> to vector<16x16xf32>
    %5 = arith.addf %2, %4 : vector<16x16xf32>
    %6 = arith.mulf %5, %5 : vector<16x16xf32>
    %cst_5 = arith.constant dense<0.000000e+00> : vector<16xf32>
    %7 = vector.multi_reduction <add>, %6, %cst_5 [1] : vector<16x16xf32> to vector<16xf32>
    %8 = vector.shape_cast %7 : vector<16xf32> to vector<16x1xf32>
    %cst_6 = arith.constant 9.99999996E-13 : f32
    %9 = vector.broadcast %cst_6 : f32 to vector<16x1xf32>
    %10 = arith.maximumf %8, %9 : vector<16x1xf32>
    %11 = tpu.reciprocal %10 {approx = true} : vector<16x1xf32> -> vector<16x1xf32>
    %12 = arith.mulf %10, %11 : vector<16x1xf32>
    %cst_7 = arith.constant 2.000000e+00 : f32
    %13 = vector.broadcast %cst_7 : f32 to vector<16x1xf32>
    %14 = arith.subf %13, %12 : vector<16x1xf32>
    %15 = arith.mulf %11, %14 : vector<16x1xf32>
    %c0_8 = arith.constant 0 : index
    %c0_9 = arith.constant 0 : index
    %16 = vector.load %arg4[%c0_8, %c0_9] : memref<16x64xf32, #tpu.memory_space<vmem>>, vector<16x64xf32>
    %cst_10 = arith.constant dense<0.000000e+00> : vector<16x64xf32>
    %17 = tpu.matmul %5, %16, %cst_10 {dimension_numbers = #tpu.dot_dimension_numbers<[1], [0], [0], [1], [0, 0, 1, 1], [], []>} : vector<16x16xf32>, vector<16x64xf32>, vector<16x64xf32> -> vector<16x64xf32>
    %c0_11 = arith.constant 0 : index
    %c0_12 = arith.constant 0 : index
    %18 = vector.load %arg5[%c0_11, %c0_12] : memref<16x64xf32, #tpu.memory_space<vmem>>, vector<16x64xf32>
    %cst_13 = arith.constant dense<0.000000e+00> : vector<16x64xf32>
    %19 = tpu.matmul %5, %18, %cst_13 {dimension_numbers = #tpu.dot_dimension_numbers<[1], [0], [0], [1], [0, 0, 1, 1], [], []>} : vector<16x16xf32>, vector<16x64xf32>, vector<16x64xf32> -> vector<16x64xf32>
    %20 = arith.mulf %17, %19 : vector<16x64xf32>
    %c0_14 = arith.constant 0 : index
    %c0_15 = arith.constant 0 : index
    %21 = vector.load %arg6[%c0_14, %c0_15] : memref<64x8xf32, #tpu.memory_space<vmem>>, vector<64x8xf32>
    %cst_16 = arith.constant dense<0.000000e+00> : vector<16x8xf32>
    %22 = tpu.matmul %20, %21, %cst_16 {dimension_numbers = #tpu.dot_dimension_numbers<[1], [0], [0], [1], [0, 0, 1, 1], [], []>} : vector<16x64xf32>, vector<64x8xf32>, vector<16x8xf32> -> vector<16x8xf32>
    %23 = vector.broadcast %15 : vector<16x1xf32> to vector<16x8xf32>
    %24 = arith.mulf %22, %23 : vector<16x8xf32>
    %c0_17 = arith.constant 0 : index
    %c0_18 = arith.constant 0 : index
    %25 = vector.load %arg7[%c0_17, %c0_18] : memref<1x8xf32, #tpu.memory_space<vmem>>, vector<1x8xf32>
    %26 = vector.broadcast %25 : vector<1x8xf32> to vector<16x8xf32>
    %27 = arith.addf %24, %26 : vector<16x8xf32>
    %c0_19 = arith.constant 0 : index
    %c0_20 = arith.constant 0 : index
    %28 = vector.load %arg8[%c0_19, %c0_20] : memref<16x8xf32, #tpu.memory_space<vmem>>, vector<16x8xf32>
    tpu.vector_store %arg8[%c0_19, %c0_20], %27 {strides = array<i32>} : memref<16x8xf32, #tpu.memory_space<vmem>>, vector<16x8xf32>,
    return
  }
  func.func @transform_0(%arg0: i32) -> (i32, i32) {
    %c0_i32 = arith.constant 0 : i32
    %c0_i32_0 = arith.constant 0 : i32
    return %arg0, %c0_i32 : i32, i32
  }
  func.func @transform_1(%arg0: i32) -> (i32, i32) {
    %c0_i32 = arith.constant 0 : i32
    %c0_i32_0 = arith.constant 0 : i32
    %c0_i32_1 = arith.constant 0 : i32
    return %c0_i32, %c0_i32_0 : i32, i32
  }
  func.func @transform_2(%arg0: i32) -> (i32, i32) {
    %c0_i32 = arith.constant 0 : i32
    %c0_i32_0 = arith.constant 0 : i32
    %c0_i32_1 = arith.constant 0 : i32
    return %c0_i32, %c0_i32_0 : i32, i32
  }
  func.func @transform_3(%arg0: i32) -> (i32, i32) {
    %c0_i32 = arith.constant 0 : i32
    %c0_i32_0 = arith.constant 0 : i32
    %c0_i32_1 = arith.constant 0 : i32
    return %c0_i32, %c0_i32_0 : i32, i32
  }
  func.func @transform_4(%arg0: i32) -> (i32, i32) {
    %c0_i32 = arith.constant 0 : i32
    %c0_i32_0 = arith.constant 0 : i32
    %c0_i32_1 = arith.constant 0 : i32
    return %c0_i32, %c0_i32_0 : i32, i32
  }
  func.func @transform_5(%arg0: i32) -> (i32, i32) {
    %c0_i32 = arith.constant 0 : i32
    %c0_i32_0 = arith.constant 0 : i32
    %c0_i32_1 = arith.constant 0 : i32
    return %c0_i32, %c0_i32_0 : i32, i32
  }
  func.func @transform_6(%arg0: i32) -> (i32, i32) {
    %c0_i32 = arith.constant 0 : i32
    %c0_i32_0 = arith.constant 0 : i32
    %c0_i32_1 = arith.constant 0 : i32
    return %c0_i32, %c0_i32_0 : i32, i32
  }
  func.func @transform_7(%arg0: i32) -> (i32, i32) {
    %c0_i32 = arith.constant 0 : i32
    %c0_i32_0 = arith.constant 0 : i32
    return %arg0, %c0_i32 : i32, i32
  }
}

</mosaic_0001>

<llo_original>
// kernel: forward.1
$region0: #{forward.1}
  #allocation0 [shape = 'u32[]', space=smem, size = 0x4, offset = 0x4, fixed_abs, tag = 'smem constant byte address 0x4 - core index']
  #allocation1 [shape = 'u32[144,128]{1,0:T(1,128)}', space=vmem, size = 0x12000, scoped, tag = 'internal scratch']
  %s0 = inlined_call_operand.vmem [shape: f32[32,16], index: 0, kind: input, shape index: {}]
  %s1 = inlined_call_operand.hbm [shape: f32[16,16], index: 1, kind: input, shape index: {}]
  %s2 = inlined_call_operand.vmem [shape: f32[1,16], index: 2, kind: input, shape index: {}]
  %s3 = inlined_call_operand.hbm [shape: f32[16,64], index: 3, kind: input, shape index: {}]
  %s4 = inlined_call_operand.hbm [shape: f32[16,64], index: 4, kind: input, shape index: {}]
  %s5 = inlined_call_operand.vmem [shape: f32[64,8], index: 5, kind: input, shape index: {}]
  %s6 = inlined_call_operand.vmem [shape: f32[1,8], index: 6, kind: input, shape index: {}]
  %s7 = inlined_call_operand.vmem [shape: f32[32,8], index: 7, kind: output, shape index: {}]
  %s8 = sld [smem:[#allocation0]]
  $region73: #{forward.1} parent=0
    _
  %s10 = ssub.s32 1, %s8
  %s11 = scalar_select 0, %s10, %s8
  $region1: #{forward.1} parent=0
    #allocation2 [shape = 'u8[8192]{0}', space=vmem, size = 0x2000, scoped, tag = 'input window, operand 1, single buffered']
    #allocation3 [shape = 's32[2]{0}', space=sflag, size = 0x8, scoped, tag = 'scoped memory for forward.1']
    #allocation4 [shape = 'u8[8192]{0}', space=vmem, size = 0x2000, scoped, tag = 'input window, operand 3, single buffered']
    #allocation5 [shape = 's32[1]{0}', space=sflag, size = 0x4, scoped, tag = 'scoped memory for forward.1']
    #allocation6 [shape = 'u8[8192]{0}', space=vmem, size = 0x2000, scoped, tag = 'input window, operand 4, single buffered']
    %12 = vsyncpa [#allocation3], 0
    %13 = vsyncpa [#allocation5], 0
    loop: start=0, step=1, limit=4
    $region2: #{forward.1} parent=1 // loop_pre_header
      _
    $region3: #{forward.1} parent=1 // loop_header
      %s15 = sphi 0, %s19
      %p16 = scmp.ge.s32.totalorder %s15, 4
      %s25 = sphi 0, %s27
      %s28 = sphi 0, %s25
      %s29 = sphi 0, %s28
      %s45 = sphi 0, %s29
      %s49 = sphi 0, %s49
      %s51 = sphi 0, %s49
      %s52 = sphi 0, %s51
      %s66 = sphi 0, %s52
      %s70 = sphi 0, %s70
      %s72 = sphi 0, %s70
      %s73 = sphi 0, %s72
      %s87 = sphi 0, %s73
      %s91 = sphi 0, %s91
      %s93 = sphi 0, %s91
      %s94 = sphi 0, %s93
      %s108 = sphi 0, %s94
      %s112 = sphi 0, %s112
      %s114 = sphi 0, %s112
      %s115 = sphi 0, %s114
      %s129 = sphi 0, %s115
      %s133 = sphi 0, %s133
      %s135 = sphi 0, %s133
      %s136 = sphi 0, %s135
      %s150 = sphi 0, %s136
      %s154 = sphi 0, %s154
      %s156 = sphi 0, %s154
      %s157 = sphi 0, %s156
      %s171 = sphi 0, %s157
      %s177 = sphi 0, %s179
      %s180 = sphi 0, %s177
      %s181 = sphi 0, %s180
      %s197 = sphi 0, %s181
    $region4: #{forward.1} parent=1 // loop_header_branch
      %18 = sbr.rel (%p16) target = $region8
    $region5: #{forward.1} parent=1 // loop_body
      %s20 = ssub.s32 %s15, 1
      %s21 = ssub.s32 %s15, 2
      %s22 = sadd.s32 %s15, 1
      %s23 = ssub.s32 %s15, %s22
      %p24 = scmp.eq.s32.totalorder %s23, 0
      %s26 = sadd.s32 %s25, 1
      %s27 = scalar_select %p24, %s25, %s26
      %p30 = pneg %p24
      %p31 = scmp.eq.s32.totalorder %s15, 1
      %p32 = por %p30, %p31
      %p33 = scmp.ne.s32.totalorder %s25, %s28
      %p34 = scmp.eq.s32.totalorder %s15, 0
      %p35 = por %p33, %p34
      %p36 = scmp.ne.s32.totalorder %s25, %s28
      %p37 = scmp.eq.s32.totalorder %s20, 1
      %p38 = por %p36, %p37
      %p39 = scmp.ne.s32.totalorder %s28, %s29
      %p40 = scmp.eq.s32.totalorder %s20, 0
      %p41 = por %p39, %p40
      %p42 = scmp.ne.s32.totalorder %s28, %s29
      %p43 = scmp.eq.s32.totalorder %s21, 1
      %p44 = por %p42, %p43
      %p46 = scmp.ne.s32.totalorder %s29, %s45
      %p47 = scmp.eq.s32.totalorder %s21, 0
      %p48 = por %p46, %p47
      %s50 = sadd.s32 %s49, 1
      %p53 = scmp.eq.s32.totalorder %s15, 1
      %p54 = scmp.ne.s32.totalorder %s49, %s51
      %p55 = scmp.eq.s32.totalorder %s15, 0
      %p56 = por %p54, %p55
      %p57 = scmp.ne.s32.totalorder %s49, %s51
      %p58 = scmp.eq.s32.totalorder %s20, 1
      %p59 = por %p57, %p58
      %p60 = scmp.ne.s32.totalorder %s51, %s52
      %p61 = scmp.eq.s32.totalorder %s20, 0
      %p62 = por %p60, %p61
      %p63 = scmp.ne.s32.totalorder %s51, %s52
      %p64 = scmp.eq.s32.totalorder %s21, 1
      %p65 = por %p63, %p64
      %p67 = scmp.ne.s32.totalorder %s52, %s66
      %p68 = scmp.eq.s32.totalorder %s21, 0
      %p69 = por %p67, %p68
      %s71 = sadd.s32 %s70, 1
      %p74 = scmp.eq.s32.totalorder %s15, 1
      %p75 = scmp.ne.s32.totalorder %s70, %s72
      %p76 = scmp.eq.s32.totalorder %s15, 0
      %p77 = por %p75, %p76
      %p78 = scmp.ne.s32.totalorder %s70, %s72
      %p79 = scmp.eq.s32.totalorder %s20, 1
      %p80 = por %p78, %p79
      %p81 = scmp.ne.s32.totalorder %s72, %s73
      %p82 = scmp.eq.s32.totalorder %s20, 0
      %p83 = por %p81, %p82
      %p84 = scmp.ne.s32.totalorder %s72, %s73
      %p85 = scmp.eq.s32.totalorder %s21, 1
      %p86 = por %p84, %p85
      %p88 = scmp.ne.s32.totalorder %s73, %s87
      %p89 = scmp.eq.s32.totalorder %s21, 0
      %p90 = por %p88, %p89
      %s92 = sadd.s32 %s91, 1
      %p95 = scmp.eq.s32.totalorder %s15, 1
      %p96 = scmp.ne.s32.totalorder %s91, %s93
      %p97 = scmp.eq.s32.totalorder %s15, 0
      %p98 = por %p96, %p97
      %p99 = scmp.ne.s32.totalorder %s91, %s93
      %p100 = scmp.eq.s32.totalorder %s20, 1
      %p101 = por %p99, %p100
      %p102 = scmp.ne.s32.totalorder %s93, %s94
      %p103 = scmp.eq.s32.totalorder %s20, 0
      %p104 = por %p102, %p103
      %p105 = scmp.ne.s32.totalorder %s93, %s94
      %p106 = scmp.eq.s32.totalorder %s21, 1
      %p107 = por %p105, %p106
      %p109 = scmp.ne.s32.totalorder %s94, %s108
      %p110 = scmp.eq.s32.totalorder %s21, 0
      %p111 = por %p109, %p110
      %s113 = sadd.s32 %s112, 1
      %p116 = scmp.eq.s32.totalorder %s15, 1
      %p117 = scmp.ne.s32.totalorder %s112, %s114
      %p118 = scmp.eq.s32.totalorder %s15, 0
      %p119 = por %p117, %p118
      %p120 = scmp.ne.s32.totalorder %s112, %s114
      %p121 = scmp.eq.s32.totalorder %s20, 1
      %p122 = por %p120, %p121
      %p123 = scmp.ne.s32.totalorder %s114, %s115
      %p124 = scmp.eq.s32.totalorder %s20, 0
      %p125 = por %p123, %p124
      %p126 = scmp.ne.s32.totalorder %s114, %s115
      %p127 = scmp.eq.s32.totalorder %s21, 1
      %p128 = por %p126, %p127
      %p130 = scmp.ne.s32.totalorder %s115, %s129
      %p131 = scmp.eq.s32.totalorder %s21, 0
      %p132 = por %p130, %p131
      %s134 = sadd.s32 %s133, 1
      %p137 = scmp.eq.s32.totalorder %s15, 1
      %p138 = scmp.ne.s32.totalorder %s133, %s135
      %p139 = scmp.eq.s32.totalorder %s15, 0
      %p140 = por %p138, %p139
      %p141 = scmp.ne.s32.totalorder %s133, %s135
      %p142 = scmp.eq.s32.totalorder %s20, 1
      %p143 = por %p141, %p142
      %p144 = scmp.ne.s32.totalorder %s135, %s136
      %p145 = scmp.eq.s32.totalorder %s20, 0
      %p146 = por %p144, %p145
      %p147 = scmp.ne.s32.totalorder %s135, %s136
      %p148 = scmp.eq.s32.totalorder %s21, 1
      %p149 = por %p147, %p148
      %p151 = scmp.ne.s32.totalorder %s136, %s150
      %p152 = scmp.eq.s32.totalorder %s21, 0
      %p153 = por %p151, %p152
      %s155 = sadd.s32 %s154, 1
      %p158 = scmp.eq.s32.totalorder %s15, 1
      %p159 = scmp.ne.s32.totalorder %s154, %s156
      %p160 = scmp.eq.s32.totalorder %s15, 0
      %p161 = por %p159, %p160
      %p162 = scmp.ne.s32.totalorder %s154, %s156
      %p163 = scmp.eq.s32.totalorder %s20, 1
      %p164 = por %p162, %p163
      %p165 = scmp.ne.s32.totalorder %s156, %s157
      %p166 = scmp.eq.s32.totalorder %s20, 0
      %p167 = por %p165, %p166
      %p168 = scmp.ne.s32.totalorder %s156, %s157
      %p169 = scmp.eq.s32.totalorder %s21, 1
      %p170 = por %p168, %p169
      %p172 = scmp.ne.s32.totalorder %s157, %s171
      %p173 = scmp.eq.s32.totalorder %s21, 0
      %p174 = por %p172, %p173
      %s175 = ssub.s32 %s15, %s22
      %p176 = scmp.eq.s32.totalorder %s175, 0
      %s178 = sadd.s32 %s177, 1
      %s179 = scalar_select %p176, %s177, %s178
      %p182 = pneg %p176
      %p183 = scmp.eq.s32.totalorder %s15, 1
      %p184 = por %p182, %p183
      %p185 = scmp.ne.s32.totalorder %s177, %s180
      %p186 = scmp.eq.s32.totalorder %s15, 0
      %p187 = por %p185, %p186
      %p188 = scmp.ne.s32.totalorder %s177, %s180
      %p189 = scmp.eq.s32.totalorder %s20, 1
      %p190 = por %p188, %p189
      %p191 = scmp.ne.s32.totalorder %s180, %s181
      %p192 = scmp.eq.s32.totalorder %s20, 0
      %p193 = por %p191, %p192
      %p194 = scmp.ne.s32.totalorder %s180, %s181
      %p195 = scmp.eq.s32.totalorder %s21, 1
      %p196 = por %p194, %p195
      %p198 = scmp.ne.s32.totalorder %s181, %s197
      %p199 = scmp.eq.s32.totalorder %s21, 0
      %p200 = por %p198, %p199
      %p201 = scmp.le.s32.totalorder 1, %s15
      %p202 = scmp.lt.s32.totalorder %s15, 3
      %p203 = pnand %p201, %p202
      %p204 = pneg %p203
      // Predicated region
      $region9: #{forward.1} parent=5 // pred_check
        _
      $region10: #{forward.1} parent=5 // pred_check_branch
        %206 = sbr.rel (%p203) target = $region12
      $region11: #{forward.1} parent=5 // pred_region
        %s207 = ssub.s32 %s15, 1
        // Predicated region
        $region13: #{forward.1} parent=11 // pred_check
          %p208 = pneg %p62
        $region14: #{forward.1} parent=11 // pred_check_branch
          %210 = sbr.rel (%p208) target = $region16
        $region15: #{forward.1} parent=11 // pred_region
          %s212 = ssub.s32 256, 256
          %213 = vsyncadd [#allocation3], %s212
          %s214 = sshll.u32 [#allocation2], 4
          %s215 = int_to_ptr.vmem [resolvable:$true] %s214
          %220 = dma.hbm_to_vmem [thread:$0]  %s1, 256, %s215, [#allocation3], 128, 128, 8
        $region16: #{forward.1} parent=11 // pred_fallthru
          _
        // Predicated region
        $region17: #{forward.1} parent=11 // pred_check
          %p221 = pneg %p83
        $region18: #{forward.1} parent=11 // pred_check_branch
          %223 = sbr.rel (%p221) target = $region20
        $region19: #{forward.1} parent=11 // pred_region
          _
        $region20: #{forward.1} parent=11 // pred_fallthru
          _
        // Predicated region
        $region21: #{forward.1} parent=11 // pred_check
          %p224 = pneg %p104
        $region22: #{forward.1} parent=11 // pred_check_branch
          %226 = sbr.rel (%p224) target = $region24
        $region23: #{forward.1} parent=11 // pred_region
          %s228 = ssub.s32 256, 256
          %229 = vsyncadd [#allocation5], %s228
          %s230 = sshll.u32 [#allocation4], 4
          %s231 = int_to_ptr.vmem [resolvable:$true] %s230
          %236 = dma.hbm_to_vmem [thread:$0]  %s3, 256, %s231, [#allocation5], 128, 128, 8
        $region24: #{forward.1} parent=11 // pred_fallthru
          _
        // Predicated region
        $region25: #{forward.1} parent=11 // pred_check
          %p237 = pneg %p125
        $region26: #{forward.1} parent=11 // pred_check_branch
          %239 = sbr.rel (%p237) target = $region28
        $region27: #{forward.1} parent=11 // pred_region
          %s241 = ssub.s32 256, 256
          %242 = vsyncadd [#allocation5], %s241
          %s243 = sshll.u32 [#allocation6], 4
          %s244 = int_to_ptr.vmem [resolvable:$true] %s243
          %249 = dma.hbm_to_vmem [thread:$0]  %s4, 256, %s244, [#allocation5], 128, 128, 8
        $region28: #{forward.1} parent=11 // pred_fallthru
          _
        // Predicated region
        $region29: #{forward.1} parent=11 // pred_check
          %p250 = pneg %p146
        $region30: #{forward.1} parent=11 // pred_check_branch
          %252 = sbr.rel (%p250) target = $region32
        $region31: #{forward.1} parent=11 // pred_region
          _
        $region32: #{forward.1} parent=11 // pred_fallthru
          _
        // Predicated region
        $region33: #{forward.1} parent=11 // pred_check
          %p253 = pneg %p167
        $region34: #{forward.1} parent=11 // pred_check_branch
          %255 = sbr.rel (%p253) target = $region36
        $region35: #{forward.1} parent=11 // pred_region
          _
        $region36: #{forward.1} parent=11 // pred_fallthru
          _
      $region12: #{forward.1} parent=5 // pred_fallthru
        _
      %p256 = scmp.lt.s32.totalorder %s15, 2
      // Predicated region
      $region37: #{forward.1} parent=5 // pred_check
        %p257 = pneg %p256
      $region38: #{forward.1} parent=5 // pred_check_branch
        %259 = sbr.rel (%p257) target = $region40
      $region39: #{forward.1} parent=5 // pred_region
        // Predicated region
        $region41: #{forward.1} parent=39 // pred_check
          %p260 = pneg %p35
        $region42: #{forward.1} parent=39 // pred_check_branch
          %262 = sbr.rel (%p260) target = $region44
        $region43: #{forward.1} parent=39 // pred_region
          %s263 = smul.u32 2, %s15
          %p264 = scmp.lt.s32.totalorder %s263, 3
          %s265 = scalar_select %p264, %s263, 3
          %s266 = smul.addr %s265, 8
          %s267 = scalar_lea.vmem %s0, %s266
          %s268 = smul.u32 2, %s15
        $region44: #{forward.1} parent=39 // pred_fallthru
          _
      $region40: #{forward.1} parent=5 // pred_fallthru
        _
      %p269 = scmp.le.s32.totalorder 1, %s15
      %p270 = scmp.lt.s32.totalorder %s15, 3
      %p271 = pnand %p269, %p270
      %p272 = pneg %p271
      // Predicated region
      $region45: #{forward.1} parent=5 // pred_check
        _
      $region46: #{forward.1} parent=5 // pred_check_branch
        %274 = sbr.rel (%p271) target = $region48
      $region47: #{forward.1} parent=5 // pred_region
        %s275 = ssub.s32 %s15, 1
        // Predicated region
        $region49: #{forward.1} parent=47 // pred_check
          %p276 = pneg %p62
        $region50: #{forward.1} parent=47 // pred_check_branch
          %278 = sbr.rel (%p276) target = $region52
        $region51: #{forward.1} parent=47 // pred_region
          %279 = dma.done [#allocation3], 256
        $region52: #{forward.1} parent=47 // pred_fallthru
          _
        // Predicated region
        $region53: #{forward.1} parent=47 // pred_check
          %p280 = pneg %p104
        $region54: #{forward.1} parent=47 // pred_check_branch
          %282 = sbr.rel (%p280) target = $region56
        $region55: #{forward.1} parent=47 // pred_region
          %283 = dma.done [#allocation5], 256
        $region56: #{forward.1} parent=47 // pred_fallthru
          _
        // Predicated region
        $region57: #{forward.1} parent=47 // pred_check
          %p284 = pneg %p125
        $region58: #{forward.1} parent=47 // pred_check_branch
          %286 = sbr.rel (%p284) target = $region60
        $region59: #{forward.1} parent=47 // pred_region
          %287 = dma.done [#allocation5], 256
        $region60: #{forward.1} parent=47 // pred_fallthru
          _
        %s288 = smul.u32 2, %s20
        %p289 = scmp.lt.s32.totalorder %s288, 3
        %s290 = scalar_select %p289, %s288, 3
        %s291 = smul.addr %s290, 8
        %s292 = scalar_lea.vmem %s0, %s291
        %p293 = pneg %p41
        %p294 = pneg %p38
        %p295 = pneg %p62
        %p296 = pneg %p59
        %p297 = pneg %p83
        %p298 = pneg %p80
        %p299 = pneg %p104
        %p300 = pneg %p101
        %p301 = pneg %p125
        %p302 = pneg %p122
        %p303 = pneg %p146
        %p304 = pneg %p143
        %p305 = pneg %p167
        %p306 = pneg %p164
        %p307 = pneg %p193
        %p308 = pneg %p190
        %s309 = smul.u32 2, %s20
        %p310 = scmp.lt.s32.totalorder %s309, 3
        %s311 = scalar_select %p310, %s309, 3
        %s312 = smul.addr %s311, 8
        %s313 = scalar_lea.vmem %s7, %s312
        %s314 = smul.u32 2, %s20
        %p315 = scmp.lt.s32.totalorder %s314, 3
        %s316 = scalar_select %p315, %s314, 3
        %s317 = smul.addr %s316, 8
        %s318 = scalar_lea.vmem %s0, %s317
        %s319 = smul.u32 2, %s20
        %s320 = smul.u32 2, %s20
        %p321 = scmp.lt.s32.totalorder %s320, 3
        %s322 = scalar_select %p321, %s320, 3
        %s323 = smul.addr %s322, 8
        %s324 = scalar_lea.vmem %s7, %s323
        %s325 = smul.u32 2, %s20
        %v326 = vld [vmem:[%s318] sm:$0xff]
        %v327 = vld [vmem:[%s318 + $0x8] sm:$0xff]
        %v328 = vld [vmem:[#allocation2] sm:$0xff]
        %v329 = vld [vmem:[#allocation2 + $0x8] sm:$0xff]
        %v330 = vld [vmem:[%s2] sm:$0x1]
        %v332 = vlaneseq
        %v333 = vshrl.u32 %v332, 7
        %v334 = vsub.s32 0, %v333
        %v335 = vrot.slane %v330, %v334
        %vm337 = vcmask 130048
        %v339 = vsel %vm337, %v326, 0
        %v342 = vsel %vm337, %v327, 0
        %344 = vmatprep.subr.mxu0 0.0
        %345 = vmatpush1.msra.mxu0 0.0
        %346 = vmatprep.subr.mxu0 0.0
        %347 = vmatpush1.msra.mxu0 0.0
        %348 = vmatprep.subr.mxu0 0.0
        %349 = vmatpush1.msra.mxu0 0.0
        %350 = vmatprep.subr.mxu0 0.0
        %351 = vmatpush1.msra.mxu0 0.0
        %352 = vmatprep.subr.mxu0 0.0
        %353 = vmatpush1.msra.mxu0 0.0
        %354 = vmatprep.subr.mxu0 0.0
        %355 = vmatpush1.msra.mxu0 0.0
        %356 = vmatprep.subr.mxu0 0.0
        %357 = vmatpush1.msra.mxu0 0.0
        %358 = vmatprep.subr.mxu0 0.0
        %359 = vmatpush1.msra.mxu0 0.0
        %360 = vmatprep.subr.mxu0 0.0
        %361 = vmatpush1.msra.mxu0 0.0
        %362 = vmatprep.subr.mxu0 0.0
        %363 = vmatpush1.msra.mxu0 0.0
        %364 = vmatprep.subr.mxu0 0.0
        %365 = vmatpush1.msra.mxu0 0.0
        %366 = vmatprep.subr.mxu0 0.0
        %367 = vmatpush1.msra.mxu0 0.0
        %368 = vmatprep.subr.mxu0 0.0
        %369 = vmatpush1.msra.mxu0 0.0
        %370 = vmatprep.subr.mxu0 0.0
        %371 = vmatpush1.msra.mxu0 0.0
        %372 = vmatprep.subr.mxu0 0.0
        %373 = vmatpush1.msra.mxu0 %v329
        %374 = vmatprep.subr.mxu0 0.0
        %375 = vmatpush1.msra.mxu0 %v328
        %376 = vmatprep.subr.mxu0 0.0
        %377 = vmatpush2.msra.mxu0 0.0
        %378 = vmatprep.subr.mxu0 0.0
        %379 = vmatpush2.msra.mxu0 0.0
        %380 = vmatprep.subr.mxu0 0.0
        %381 = vmatpush2.msra.mxu0 0.0
        %382 = vmatprep.subr.mxu0 0.0
        %383 = vmatpush2.msra.mxu0 0.0
        %384 = vmatprep.subr.mxu0 0.0
        %385 = vmatpush2.msra.mxu0 0.0
        %386 = vmatprep.subr.mxu0 0.0
        %387 = vmatpush2.msra.mxu0 0.0
        %388 = vmatprep.subr.mxu0 0.0
        %389 = vmatpush2.msra.mxu0 0.0
        %390 = vmatprep.subr.mxu0 0.0
        %391 = vmatpush2.msra.mxu0 0.0
        %392 = vmatprep.subr.mxu0 0.0
        %393 = vmatpush2.msra.mxu0 0.0
        %394 = vmatprep.subr.mxu0 0.0
        %395 = vmatpush2.msra.mxu0 0.0
        %396 = vmatprep.subr.mxu0 0.0
        %397 = vmatpush2.msra.mxu0 0.0
        %398 = vmatprep.subr.mxu0 0.0
        %399 = vmatpush2.msra.mxu0 0.0
        %400 = vmatprep.subr.mxu0 0.0
        %401 = vmatpush2.msra.mxu0 0.0
        %402 = vmatprep.subr.mxu0 0.0
        %403 = vmatpush2.msra.mxu0 0.0
        %404 = vmatprep.subr.mxu0 0.0
        %405 = vmatpush2.msra.mxu0 0.0
        %406 = vmatprep.subr.mxu0 0.0
        %407 = vmatpush2.msra.mxu0 0.0
        %408 = vmatprep.mubr.f32.mxu0 0.0
        %409 = vmatmul.mubr.f32.gmra.mxu0 %v339
        %v410 = vpop.f32.mrf.mxu0
        %v411 = vadd.f32 %v335, %v410
        %v412 = vpop.f32.mrf.mxu0
        %413 = vmatprep.mubr.f32.mxu0 0.0
        %414 = vmatmul.mubr.f32.gmra.mxu0 %v342
        %v415 = vpop.f32.mrf.mxu0
        %v416 = vadd.f32 %v335, %v415
        %v417 = vpop.f32.mrf.mxu0
        %418 = vdwg.mxu0
        %v419 = vmul.f32 %v411, %v411
        %v420 = vmul.f32 %v416, %v416
        %v421 = vsel %vm337, %v419, 0.0
        %422 = vadd.xlane.f32.xlu0 %v421
        %v423 = vpop.xlane.xlu0 %422
        %v424 = vsel %vm337, %v420, 0.0
        %425 = vadd.xlane.f32.xlu0 %v424
        %v426 = vpop.xlane.xlu0 %425
        %v427 = vmax.f32 %v423, 1e-12
        %v428 = vmax.f32 %v426, 1e-12
        %v429 = vrcp.pop %v427
        %v430 = vrcp.pop %v428
        %v431 = vmul.f32 %v427, %v429
        %v432 = vmul.f32 %v428, %v430
        %v433 = vsub.f32 2.0, %v431
        %v434 = vsub.f32 2.0, %v432
        %v435 = vmul.f32 %v429, %v433
        %v436 = vmul.f32 %v430, %v434
        %v437 = vld [vmem:[#allocation4] sm:$0xff]
        %v438 = vld [vmem:[#allocation4 + $0x8] sm:$0xff]
        %v440 = vsel %vm337, %v411, 0
        %v443 = vsel %vm337, %v416, 0
        %445 = vmatprep.subr.mxu0 0.0
        %446 = vmatpush1.msra.mxu0 0.0
        %447 = vmatprep.subr.mxu0 0.0
        %448 = vmatpush1.msra.mxu0 0.0
        %449 = vmatprep.subr.mxu0 0.0
        %450 = vmatpush1.msra.mxu0 0.0
        %451 = vmatprep.subr.mxu0 0.0
        %452 = vmatpush1.msra.mxu0 0.0
        %453 = vmatprep.subr.mxu0 0.0
        %454 = vmatpush1.msra.mxu0 0.0
        %455 = vmatprep.subr.mxu0 0.0
        %456 = vmatpush1.msra.mxu0 0.0
        %457 = vmatprep.subr.mxu0 0.0
        %458 = vmatpush1.msra.mxu0 0.0
        %459 = vmatprep.subr.mxu0 0.0
        %460 = vmatpush1.msra.mxu0 0.0
        %461 = vmatprep.subr.mxu0 0.0
        %462 = vmatpush1.msra.mxu0 0.0
        %463 = vmatprep.subr.mxu0 0.0
        %464 = vmatpush1.msra.mxu0 0.0
        %465 = vmatprep.subr.mxu0 0.0
        %466 = vmatpush1.msra.mxu0 0.0
        %467 = vmatprep.subr.mxu0 0.0
        %468 = vmatpush1.msra.mxu0 0.0
        %469 = vmatprep.subr.mxu0 0.0
        %470 = vmatpush1.msra.mxu0 0.0
        %471 = vmatprep.subr.mxu0 0.0
        %472 = vmatpush1.msra.mxu0 0.0
        %473 = vmatprep.subr.mxu0 0.0
        %474 = vmatpush1.msra.mxu0 %v438
        %475 = vmatprep.subr.mxu0 0.0
        %476 = vmatpush1.msra.mxu0 %v437
        %477 = vmatprep.subr.mxu0 0.0
        %478 = vmatpush2.msra.mxu0 0.0
        %479 = vmatprep.subr.mxu0 0.0
        %480 = vmatpush2.msra.mxu0 0.0
        %481 = vmatprep.subr.mxu0 0.0
        %482 = vmatpush2.msra.mxu0 0.0
        %483 = vmatprep.subr.mxu0 0.0
        %484 = vmatpush2.msra.mxu0 0.0
        %485 = vmatprep.subr.mxu0 0.0
        %486 = vmatpush2.msra.mxu0 0.0
        %487 = vmatprep.subr.mxu0 0.0
        %488 = vmatpush2.msra.mxu0 0.0
        %489 = vmatprep.subr.mxu0 0.0
        %490 = vmatpush2.msra.mxu0 0.0
        %491 = vmatprep.subr.mxu0 0.0
        %492 = vmatpush2.msra.mxu0 0.0
        %493 = vmatprep.subr.mxu0 0.0
        %494 = vmatpush2.msra.mxu0 0.0
        %495 = vmatprep.subr.mxu0 0.0
        %496 = vmatpush2.msra.mxu0 0.0
        %497 = vmatprep.subr.mxu0 0.0
        %498 = vmatpush2.msra.mxu0 0.0
        %499 = vmatprep.subr.mxu0 0.0
        %500 = vmatpush2.msra.mxu0 0.0
        %501 = vmatprep.subr.mxu0 0.0
        %502 = vmatpush2.msra.mxu0 0.0
        %503 = vmatprep.subr.mxu0 0.0
        %504 = vmatpush2.msra.mxu0 0.0
        %505 = vmatprep.subr.mxu0 0.0
        %506 = vmatpush2.msra.mxu0 0.0
        %507 = vmatprep.subr.mxu0 0.0
        %508 = vmatpush2.msra.mxu0 0.0
        %509 = vmatprep.mubr.f32.mxu0 0.0
        %510 = vmatmul.mubr.f32.gmra.mxu0 %v440
        %v511 = vpop.f32.mrf.mxu0
        %v512 = vadd.f32 0.0, %v511
        %v513 = vpop.f32.mrf.mxu0
        %514 = vmatprep.mubr.f32.mxu0 0.0
        %515 = vmatmul.mubr.f32.gmra.mxu0 %v443
        %v516 = vpop.f32.mrf.mxu0
        %v517 = vadd.f32 0.0, %v516
        %v518 = vpop.f32.mrf.mxu0
        %519 = vdwg.mxu0
        %v520 = vld [vmem:[#allocation6] sm:$0xff]
        %v521 = vld [vmem:[#allocation6 + $0x8] sm:$0xff]
        %522 = vmatprep.subr.mxu0 0.0
        %523 = vmatpush1.msra.mxu0 0.0
        %524 = vmatprep.subr.mxu0 0.0
        %525 = vmatpush1.msra.mxu0 0.0
        %526 = vmatprep.subr.mxu0 0.0
        %527 = vmatpush1.msra.mxu0 0.0
        %528 = vmatprep.subr.mxu0 0.0
        %529 = vmatpush1.msra.mxu0 0.0
        %530 = vmatprep.subr.mxu0 0.0
        %531 = vmatpush1.msra.mxu0 0.0
        %532 = vmatprep.subr.mxu0 0.0
        %533 = vmatpush1.msra.mxu0 0.0
        %534 = vmatprep.subr.mxu0 0.0
        %535 = vmatpush1.msra.mxu0 0.0
        %536 = vmatprep.subr.mxu0 0.0
        %537 = vmatpush1.msra.mxu0 0.0
        %538 = vmatprep.subr.mxu0 0.0
        %539 = vmatpush1.msra.mxu0 0.0
        %540 = vmatprep.subr.mxu0 0.0
        %541 = vmatpush1.msra.mxu0 0.0
        %542 = vmatprep.subr.mxu0 0.0
        %543 = vmatpush1.msra.mxu0 0.0
        %544 = vmatprep.subr.mxu0 0.0
        %545 = vmatpush1.msra.mxu0 0.0
        %546 = vmatprep.subr.mxu0 0.0
        %547 = vmatpush1.msra.mxu0 0.0
        %548 = vmatprep.subr.mxu0 0.0
        %549 = vmatpush1.msra.mxu0 0.0
        %550 = vmatprep.subr.mxu0 0.0
        %551 = vmatpush1.msra.mxu0 %v521
        %552 = vmatprep.subr.mxu0 0.0
        %553 = vmatpush1.msra.mxu0 %v520
        %554 = vmatprep.subr.mxu0 0.0
        %555 = vmatpush2.msra.mxu0 0.0
        %556 = vmatprep.subr.mxu0 0.0
        %557 = vmatpush2.msra.mxu0 0.0
        %558 = vmatprep.subr.mxu0 0.0
        %559 = vmatpush2.msra.mxu0 0.0
        %560 = vmatprep.subr.mxu0 0.0
        %561 = vmatpush2.msra.mxu0 0.0
        %562 = vmatprep.subr.mxu0 0.0
        %563 = vmatpush2.msra.mxu0 0.0
        %564 = vmatprep.subr.mxu0 0.0
        %565 = vmatpush2.msra.mxu0 0.0
        %566 = vmatprep.subr.mxu0 0.0
        %567 = vmatpush2.msra.mxu0 0.0
        %568 = vmatprep.subr.mxu0 0.0
        %569 = vmatpush2.msra.mxu0 0.0
        %570 = vmatprep.subr.mxu0 0.0
        %571 = vmatpush2.msra.mxu0 0.0
        %572 = vmatprep.subr.mxu0 0.0
        %573 = vmatpush2.msra.mxu0 0.0
        %574 = vmatprep.subr.mxu0 0.0
        %575 = vmatpush2.msra.mxu0 0.0
        %576 = vmatprep.subr.mxu0 0.0
        %577 = vmatpush2.msra.mxu0 0.0
        %578 = vmatprep.subr.mxu0 0.0
        %579 = vmatpush2.msra.mxu0 0.0
        %580 = vmatprep.subr.mxu0 0.0
        %581 = vmatpush2.msra.mxu0 0.0
        %582 = vmatprep.subr.mxu0 0.0
        %583 = vmatpush2.msra.mxu0 0.0
        %584 = vmatprep.subr.mxu0 0.0
        %585 = vmatpush2.msra.mxu0 0.0
        %586 = vmatprep.mubr.f32.mxu0 0.0
        %587 = vmatmul.mubr.f32.gmra.mxu0 %v440
        %v588 = vpop.f32.mrf.mxu0
        %v589 = vadd.f32 0.0, %v588
        %v590 = vpop.f32.mrf.mxu0
        %591 = vmatprep.mubr.f32.mxu0 0.0
        %592 = vmatmul.mubr.f32.gmra.mxu0 %v443
        %v593 = vpop.f32.mrf.mxu0
        %v594 = vadd.f32 0.0, %v593
        %v595 = vpop.f32.mrf.mxu0
        %596 = vdwg.mxu0
        %v597 = vmul.f32 %v512, %v589
        %v598 = vmul.f32 %v517, %v594
        %v599 = vld [vmem:[%s5] sm:$0xff]
        %v600 = vld [vmem:[%s5 + $0x8] sm:$0xff]
        %v601 = vld [vmem:[%s5 + $0x10] sm:$0xff]
        %v602 = vld [vmem:[%s5 + $0x18] sm:$0xff]
        %v603 = vld [vmem:[%s5 + $0x20] sm:$0xff]
        %v604 = vld [vmem:[%s5 + $0x28] sm:$0xff]
        %v605 = vld [vmem:[%s5 + $0x30] sm:$0xff]
        %v606 = vld [vmem:[%s5 + $0x38] sm:$0xff]
        %vm607 = vcmask 523264
        %v609 = vsel %vm607, %v597, 0
        %v612 = vsel %vm607, %v598, 0
        %614 = vmatprep.subr.mxu0 0.0
        %615 = vmatpush1.msra.mxu0 0.0
        %616 = vmatprep.subr.mxu0 0.0
        %617 = vmatpush1.msra.mxu0 0.0
        %618 = vmatprep.subr.mxu0 0.0
        %619 = vmatpush1.msra.mxu0 0.0
        %620 = vmatprep.subr.mxu0 0.0
        %621 = vmatpush1.msra.mxu0 0.0
        %622 = vmatprep.subr.mxu0 0.0
        %623 = vmatpush1.msra.mxu0 0.0
        %624 = vmatprep.subr.mxu0 0.0
        %625 = vmatpush1.msra.mxu0 0.0
        %626 = vmatprep.subr.mxu0 0.0
        %627 = vmatpush1.msra.mxu0 0.0
        %628 = vmatprep.subr.mxu0 0.0
        %629 = vmatpush1.msra.mxu0 0.0
        %630 = vmatprep.subr.mxu0 0.0
        %631 = vmatpush1.msra.mxu0 %v606
        %632 = vmatprep.subr.mxu0 0.0
        %633 = vmatpush1.msra.mxu0 %v605
        %634 = vmatprep.subr.mxu0 0.0
        %635 = vmatpush1.msra.mxu0 %v604
        %636 = vmatprep.subr.mxu0 0.0
        %637 = vmatpush1.msra.mxu0 %v603
        %638 = vmatprep.subr.mxu0 0.0
        %639 = vmatpush1.msra.mxu0 %v602
        %640 = vmatprep.subr.mxu0 0.0
        %641 = vmatpush1.msra.mxu0 %v601
        %642 = vmatprep.subr.mxu0 0.0
        %643 = vmatpush1.msra.mxu0 %v600
        %644 = vmatprep.subr.mxu0 0.0
        %645 = vmatpush1.msra.mxu0 %v599
        %646 = vmatprep.subr.mxu0 0.0
        %647 = vmatpush2.msra.mxu0 0.0
        %648 = vmatprep.subr.mxu0 0.0
        %649 = vmatpush2.msra.mxu0 0.0
        %650 = vmatprep.subr.mxu0 0.0
        %651 = vmatpush2.msra.mxu0 0.0
        %652 = vmatprep.subr.mxu0 0.0
        %653 = vmatpush2.msra.mxu0 0.0
        %654 = vmatprep.subr.mxu0 0.0
        %655 = vmatpush2.msra.mxu0 0.0
        %656 = vmatprep.subr.mxu0 0.0
        %657 = vmatpush2.msra.mxu0 0.0
        %658 = vmatprep.subr.mxu0 0.0
        %659 = vmatpush2.msra.mxu0 0.0
        %660 = vmatprep.subr.mxu0 0.0
        %661 = vmatpush2.msra.mxu0 0.0
        %662 = vmatprep.subr.mxu0 0.0
        %663 = vmatpush2.msra.mxu0 0.0
        %664 = vmatprep.subr.mxu0 0.0
        %665 = vmatpush2.msra.mxu0 0.0
        %666 = vmatprep.subr.mxu0 0.0
        %667 = vmatpush2.msra.mxu0 0.0
        %668 = vmatprep.subr.mxu0 0.0
        %669 = vmatpush2.msra.mxu0 0.0
        %670 = vmatprep.subr.mxu0 0.0
        %671 = vmatpush2.msra.mxu0 0.0
        %672 = vmatprep.subr.mxu0 0.0
        %673 = vmatpush2.msra.mxu0 0.0
        %674 = vmatprep.subr.mxu0 0.0
        %675 = vmatpush2.msra.mxu0 0.0
        %676 = vmatprep.subr.mxu0 0.0
        %677 = vmatpush2.msra.mxu0 0.0
        %678 = vmatprep.mubr.f32.mxu0 0.0
        %679 = vmatmul.mubr.f32.gmra.mxu0 %v609
        %v680 = vpop.f32.mrf.mxu0
        %v681 = vadd.f32 0.0, %v680
        %v682 = vpop.f32.mrf.mxu0
        %683 = vmatprep.mubr.f32.mxu0 0.0
        %684 = vmatmul.mubr.f32.gmra.mxu0 %v612
        %v685 = vpop.f32.mrf.mxu0
        %v686 = vadd.f32 0.0, %v685
        %v687 = vpop.f32.mrf.mxu0
        %688 = vdwg.mxu0
        %v689 = vmul.f32 %v681, %v435
        %v690 = vmul.f32 %v686, %v436
        %v691 = vld [vmem:[%s6] sm:$0x1]
        %v693 = vlaneseq
        %v694 = vshrl.u32 %v693, 7
        %v695 = vsub.s32 0, %v694
        %v696 = vrot.slane %v691, %v695
        %v698 = vadd.f32 %v689, %v696
        %v699 = vadd.f32 %v690, %v696
        %vm700 = vcmask 64512
        %701 = vst.msk [vmem:[%s324] sm:$0xff] %vm700, %v698
        %702 = vst.msk [vmem:[%s324 + $0x8] sm:$0xff] %vm700, %v699
        %s703 = smul.u32 2, %s20
        %p704 = scmp.lt.s32.totalorder %s703, 3
        %s705 = scalar_select %p704, %s703, 3
        %s706 = smul.addr %s705, 8
        %s707 = scalar_lea.vmem %s7, %s706
        // Predicated region
        $region61: #{forward.1} parent=47 // pred_check
          %p708 = pneg %p190
        $region62: #{forward.1} parent=47 // pred_check_branch
          %710 = sbr.rel (%p708) target = $region64
        $region63: #{forward.1} parent=47 // pred_region
          %s711 = smul.u32 2, %s20
        $region64: #{forward.1} parent=47 // pred_fallthru
          _
      $region48: #{forward.1} parent=5 // pred_fallthru
        _
      %p712 = scmp.le.s32.totalorder 2, %s15
      // Predicated region
      $region65: #{forward.1} parent=5 // pred_check
        %p713 = pneg %p712
      $region66: #{forward.1} parent=5 // pred_check_branch
        %715 = sbr.rel (%p713) target = $region68
      $region67: #{forward.1} parent=5 // pred_region
        %s716 = ssub.s32 %s15, 2
        // Predicated region
        $region69: #{forward.1} parent=67 // pred_check
          %p717 = pneg %p196
        $region70: #{forward.1} parent=67 // pred_check_branch
          %719 = sbr.rel (%p717) target = $region72
        $region71: #{forward.1} parent=67 // pred_region
          %s720 = smul.u32 2, %s21
          %p721 = scmp.lt.s32.totalorder %s720, 3
          %s722 = scalar_select %p721, %s720, 3
          %s723 = smul.addr %s722, 8
          %s724 = scalar_lea.vmem %s7, %s723
        $region72: #{forward.1} parent=67 // pred_fallthru
          _
      $region68: #{forward.1} parent=5 // pred_fallthru
        _
    $region6: #{forward.1} parent=1 // loop_footer
      %s19 = sadd.s32 1, %s15
    $region7: #{forward.1} parent=1 // loop_footer_branch
      %14 = sbr.rel target = $region3
    $region8: #{forward.1} parent=1 // loop_exit
      _
    %725 = vsyncpa [#allocation3], 1
    %s726 = scalar_lea.sflag [#allocation3], 1
    %727 = vsyncpa %s726, 1
    %728 = vsyncpa [#allocation5], 1

</llo_original>
